<compile_context>
chip_gen: v6e
topology: v6e:2x2x1
jax: 0.10.0
libtpu: 0.0.40
codegen_flags: <defaults>
</compile_context>

<pallas_src>
import jax
import jax.numpy as jnp
from jax.experimental import pallas as pl
from jax.experimental.pallas import tpu as pltpu


def _embedding_kernel(tok_ids_ref,   # SMEM (B*S,) int32, scalar-prefetched token ids
                      seg_ids_ref,   # VMEM (T, 1) int32 segment ids for this chunk
                      seg_tab_ref,   # VMEM (n_seg, E) resident segment table
                      pos_ref,       # VMEM (max_len, E) resident position table
                      tok_hbm_ref,   # HBM  (V, E) token table (pl.ANY, manual DMA)
                      out_ref,       # VMEM (T, E) output tile
                      tok_rows_ref,  # VMEM (T, E) scratch: gathered token rows
                      sem):          # scalar DMA semaphore
    T, E = out_ref.shape
    V = tok_hbm_ref.shape[0]
    c = pl.program_id(0)
    base = c * T

    # ---- 1) token rows: per-row DMA gather from the HBM-resident table -----
    # Issue all T row copies up front; they overlap each other and the VPU
    # work below, and are drained right before the final store.
    @pl.loop(0, T)
    def _issue(t):
        raw = tok_ids_ref[base + t]
        pl.debug_check(jnp.logical_and(raw >= 0, raw < V),
                       "token id out of range")
        tid = jnp.clip(raw, 0, V - 1)          # keep the DMA in bounds
        pltpu.make_async_copy(tok_hbm_ref.at[pl.ds(tid, 1), :],
                              tok_rows_ref.at[pl.ds(t, 1), :],
                              sem).start()

    # ---- 2) segment rows: tiny-table VPU select (no MXU work) --------------
    seg_ids = seg_ids_ref[...]                                   # (T, 1) int32
    n_seg = seg_tab_ref.shape[0]
    seg_rows = jnp.broadcast_to(
        seg_tab_ref[0:1, :].astype(jnp.float32), (T, E))
    for s in range(1, n_seg):                  # static loop; n_seg is tiny (2)
        seg_rows = jnp.where(seg_ids == s,
                             seg_tab_ref[s:s + 1, :].astype(jnp.float32),
                             seg_rows)

    # ---- 3) position rows: slice the VMEM-resident table (no HBM re-read) --
    chunks_per_seq = pos_ref.shape[0] // T     # valid because S == max_len
    p0 = pl.multiple_of((c % chunks_per_seq) * T, 8)
    pos_rows = pos_ref[pl.ds(p0, T), :].astype(jnp.float32)

    # ---- 4) drain the gather, fuse the adds, lane-dense store ---------------
    @pl.loop(0, T)
    def _drain(t):
        pltpu.make_async_copy(tok_hbm_ref.at[pl.ds(0, 1), :],
                              tok_rows_ref.at[pl.ds(t, 1), :],
                              sem).wait()

    out_ref[...] = (tok_rows_ref[...].astype(jnp.float32) + seg_rows + pos_rows
                    ).astype(out_ref.dtype)


def _pick_chunk(seq_len, batch, cap=512):
    """Largest multiple-of-8 divisor of seq_len (<= cap), preferring >= 2 chunks total."""
    best = None
    for t in range(min(cap, seq_len), 7, -8):
        if seq_len % t == 0:
            if best is None:
                best = t
            if batch * (seq_len // t) >= 2:    # keep both v7x TensorCores busy
                return t
    return best


def _vmem_limit_bytes(T, E, max_len, n_seg, itemsize):
    pad8 = lambda n: -(-n // 8) * 8
    pad128 = lambda n: -(-n // 128) * 128
    tile = T * pad128(E) * itemsize
    budget = (2 * tile                                      # double-buffered out tile
              + tile                                        # token-row gather scratch
              + 2 * T * 128 * 4                             # (T,1) int32 seg-id tiles
              + 2 * pad8(n_seg) * pad128(E) * itemsize      # resident segment table
              + 2 * pad8(max_len) * pad128(E) * itemsize)   # resident position table
    return int(min(48 * 1024 * 1024, max(16 * 1024 * 1024, 2 * budget)))


def bert_embedding(seq, seg, tok_table, seg_table, pos_table):
    """tok_embed(seq) + seg_embed(seg) + pos_embed(arange(max_len)); dropout = identity."""
    B, S = seq.shape
    V, E = tok_table.shape
    n_seg = seg_table.shape[0]
    max_len = pos_table.shape[0]
    # The PyTorch forward broadcasts (B,S,E) + (max_len,E) -> requires S == max_len.
    assert S == max_len, "BERTEmbedding.forward requires seq_len == max_len"
    assert S % 8 == 0, "seq_len must be a multiple of 8 for sublane-aligned tiles"

    T = _pick_chunk(S, B)                  # tokens per grid step (multiple of 8, divides S)
    num_chunks = (B * S) // T

    out_dtype = tok_table.dtype            # output dtype follows the table dtype

    tok_ids = seq.reshape(B * S).astype(jnp.int32)      # scalar-prefetched to SMEM (1-D)
    seg_col = seg.reshape(B * S, 1).astype(jnp.int32)   # chunked (T, 1) VMEM blocks

    grid_spec = pltpu.PrefetchScalarGridSpec(
        num_scalar_prefetch=1,
        grid=(num_chunks,),
        in_specs=[
            pl.BlockSpec((T, 1), lambda c, ids: (c, 0)),            # segment ids chunk
            pl.BlockSpec(seg_table.shape, lambda c, ids: (0, 0)),   # resident seg table
            pl.BlockSpec(pos_table.shape, lambda c, ids: (0, 0)),   # resident pos table
            pl.BlockSpec(memory_space=pl.ANY),                      # token table in HBM
        ],
        out_specs=pl.BlockSpec((T, E), lambda c, ids: (c, 0)),
        scratch_shapes=[
            pltpu.VMEM((T, E), tok_table.dtype),                    # gathered token rows
            pltpu.SemaphoreType.DMA(()),
        ],
    )

    out_flat = pl.pallas_call(
        _embedding_kernel,
        grid_spec=grid_spec,
        out_shape=jax.ShapeDtypeStruct((B * S, E), out_dtype),
        compiler_params=pltpu.CompilerParams(
            dimension_semantics=("parallel",),
            vmem_limit_bytes=_vmem_limit_bytes(
                T, E, max_len, n_seg, jnp.dtype(out_dtype).itemsize)),
    )(tok_ids, seg_col, seg_table, pos_table, tok_table)

    return out_flat.reshape(B, S, E)


if __name__ == "__main__":
    # Module hyperparameters (small, consistent with the forward):
    vocab_size = 64
    n_segments = 2
    max_len    = 8      # forward requires seq length == max_len for the pos broadcast
    embed_dim  = 128
    B, S       = 2, max_len

    key = jax.random.PRNGKey(0)
    k_tok, k_seg, k_pos, k_ids, k_sg = jax.random.split(key, 5)

    tok_table = jax.random.normal(k_tok, (vocab_size, embed_dim), dtype=jnp.float32)
    seg_table = jax.random.normal(k_seg, (n_segments, embed_dim), dtype=jnp.float32)
    pos_table = jax.random.normal(k_pos, (max_len, embed_dim), dtype=jnp.float32)

    seq = jax.random.randint(k_ids, (B, S), 0, vocab_size, dtype=jnp.int32)
    seg = jax.random.randint(k_sg, (B, S), 0, n_segments, dtype=jnp.int32)

    out = bert_embedding(seq, seg, tok_table, seg_table, pos_table)
    out = jax.block_until_ready(out)

    # Pure-JAX reference for correctness
    ref = tok_table[seq] + seg_table[seg] + pos_table[jnp.arange(max_len)][None, :, :]
    assert out.shape == (B, S, embed_dim)
    assert jnp.allclose(out, ref, atol=1e-5), "mismatch vs reference"

    print("KERNEL_OK")
</pallas_src>

<mosaic_0001>
module attributes {stable_mosaic.version = 11 : i64} {
  func.func @_embedding_kernel(%arg0: i32, %arg1: memref<16xi32, #tpu.memory_space<smem>>, %arg2: memref<8x1xi32, #tpu.memory_space<vmem>>, %arg3: memref<2x128xf32, #tpu.memory_space<vmem>>, %arg4: memref<8x128xf32, #tpu.memory_space<vmem>>, %arg5: memref<64x128xf32, #tpu.memory_space<any>>, %arg6: memref<8x128xf32, #tpu.memory_space<vmem>>, %arg7: memref<8x128xf32, #tpu.memory_space<vmem>>, %arg8: memref<!tpu.dma_semaphore, #tpu.memory_space<semaphore_mem>>) attributes {dimension_semantics = [#tpu.dimension_semantics<parallel>], iteration_bounds = array<i64: 2>, scalar_prefetch = 1 : i64, scratch_operands = 2 : i64, tpu.core_type = #tpu.core_type<tc>, window_params = [{transform_indices = @transform_0, window_bounds = array<i64: 8, 1>}, {pipeline_mode = #tpu.pipeline_mode<synchronous>, transform_indices = @transform_1, window_bounds = array<i64: 2, 128>}, {pipeline_mode = #tpu.pipeline_mode<synchronous>, transform_indices = @transform_2, window_bounds = array<i64: 8, 128>}, {}, {transform_indices = @transform_4, window_bounds = array<i64: 8, 128>}]} {
    %c8_i32 = arith.constant 8 : i32
    %0 = arith.muli %arg0, %c8_i32 : i32
    %c0_i32 = arith.constant 0 : i32
    %c8_i32_0 = arith.constant 8 : i32
    %1 = arith.addi %c0_i32, %c8_i32_0 : i32
    %c1_i32 = arith.constant 1 : i32
    scf.for %arg9 = %c0_i32 to %1 step %c1_i32  : i32 {
      %c1_i32_23 = arith.constant 1 : i32
      %33 = arith.muli %arg9, %c1_i32_23 : i32
      %c0_i32_24 = arith.constant 0 : i32
      %34 = arith.addi %c0_i32_24, %33 : i32
      %35 = arith.addi %0, %34 : i32
      %36 = arith.index_cast %35 : i32 to index
      %37 = memref.load %arg1[%36] : memref<16xi32, #tpu.memory_space<smem>>
      %c0_i32_25 = arith.constant 0 : i32
      %38 = arith.cmpi sge, %37, %c0_i32_25 : i32
      %c64_i32 = arith.constant 64 : i32
      %39 = arith.cmpi slt, %37, %c64_i32 : i32
      %40 = arith.andi %38, %39 : i1
      %true = arith.constant true
      %41 = arith.xori %40, %true : i1
      %false = arith.constant false
      %42 = arith.ori %false, %41 : i1
      %false_26 = arith.constant false
      %c1_i32_27 = arith.constant 1 : i32
      %c-1_i32 = arith.constant -1 : i32
      %43 = arith.select %false_26, %c-1_i32, %c1_i32_27 : i32
      %c0_i32_28 = arith.constant 0 : i32
      %c63_i32 = arith.constant 63 : i32
      %44 = arith.maxsi %c0_i32_28, %37 : i32
      %45 = arith.minsi %c63_i32, %44 : i32
      %c0_i32_29 = arith.constant 0 : i32
      %46 = tpu.memref_slice %arg5[%45, %c0_i32_29] : memref<64x128xf32, #tpu.memory_space<any>> -> memref<1x128xf32, #tpu.memory_space<any>>
      %c0_i32_30 = arith.constant 0 : i32
      %47 = tpu.memref_slice %arg7[%34, %c0_i32_30] : memref<8x128xf32, #tpu.memory_space<vmem>> -> memref<1x128xf32, #tpu.memory_space<vmem>>
      tpu.enqueue_dma source(%46 : memref<1x128xf32, #tpu.memory_space<any>>) target(%47 : memref<1x128xf32, #tpu.memory_space<vmem>>) target_semaphore(%arg8 : memref<!tpu.dma_semaphore, #tpu.memory_space<semaphore_mem>>)
    }
    %c8_i32_1 = arith.constant 8 : i32
    %c0 = arith.constant 0 : index
    %c0_2 = arith.constant 0 : index
    %2 = vector.load %arg2[%c0, %c0_2] : memref<8x1xi32, #tpu.memory_space<vmem>>, vector<8x1xi32>
    %c0_3 = arith.constant 0 : index
    %c0_4 = arith.constant 0 : index
    %3 = vector.load %arg3[%c0_3, %c0_4] : memref<2x128xf32, #tpu.memory_space<vmem>>, vector<1x128xf32>
    %4 = vector.shape_cast %3 : vector<1x128xf32> to vector<1x128xf32>
    %5 = vector.broadcast %4 : vector<1x128xf32> to vector<8x128xf32>
    %c1_i32_5 = arith.constant 1 : i32
    %6 = vector.broadcast %c1_i32_5 : i32 to vector<8x1xi32>
    %7 = arith.cmpi eq, %2, %6 : vector<8x1xi32>
    %c1 = arith.constant 1 : index
    %c0_6 = arith.constant 0 : index
    %8 = vector.load %arg3[%c1, %c0_6] : memref<2x128xf32, #tpu.memory_space<vmem>>, vector<1x128xf32>
    %9 = vector.shape_cast %7 : vector<8x1xi1> to vector<8x1xi1>
    %10 = vector.broadcast %9 : vector<8x1xi1> to vector<8x128xi1>
    %11 = vector.shape_cast %8 : vector<1x128xf32> to vector<1x128xf32>
    %12 = vector.broadcast %11 : vector<1x128xf32> to vector<8x128xf32>
    %13 = arith.select %10, %12, %5 : vector<8x128xi1>, vector<8x128xf32>
    %c1_i32_7 = arith.constant 1 : i32
    %c0_i32_8 = arith.constant 0 : i32
    %14 = arith.cmpi eq, %c1_i32_7, %c0_i32_8 : i32
    %c1_i32_9 = arith.constant 1 : i32
    %15 = arith.select %14, %c1_i32_9, %c1_i32_7 : i32
    %16 = arith.remsi %arg0, %15 : i32
    %c0_i32_10 = arith.constant 0 : i32
    %17 = arith.cmpi ne, %16, %c0_i32_10 : i32
    %c0_i32_11 = arith.constant 0 : i32
    %18 = arith.cmpi slt, %16, %c0_i32_11 : i32
    %c0_i32_12 = arith.constant 0 : i32
    %19 = arith.cmpi slt, %15, %c0_i32_12 : i32
    %20 = arith.xori %18, %19 : i1
    %21 = arith.andi %20, %17 : i1
    %22 = arith.addi %16, %15 : i32
    %23 = arith.select %21, %22, %16 : i32
    %c8_i32_13 = arith.constant 8 : i32
    %24 = arith.muli %23, %c8_i32_13 : i32
    %25 = tpu.assume_multiple %24, 8 : i32
    %26 = arith.index_cast %25 : i32 to index
    %c0_14 = arith.constant 0 : index
    %27 = vector.load %arg4[%26, %c0_14] : memref<8x128xf32, #tpu.memory_space<vmem>>, vector<8x128xf32>
    %c0_i32_15 = arith.constant 0 : i32
    %c8_i32_16 = arith.constant 8 : i32
    %28 = arith.addi %c0_i32_15, %c8_i32_16 : i32
    %c1_i32_17 = arith.constant 1 : i32
    scf.for %arg9 = %c0_i32_15 to %28 step %c1_i32_17  : i32 {
      %c1_i32_23 = arith.constant 1 : i32
      %33 = arith.muli %arg9, %c1_i32_23 : i32
      %c0_i32_24 = arith.constant 0 : i32
      %34 = arith.addi %c0_i32_24, %33 : i32
      %c0_i32_25 = arith.constant 0 : i32
      %c0_i32_26 = arith.constant 0 : i32
      %35 = tpu.memref_slice %arg5[%c0_i32_25, %c0_i32_26] : memref<64x128xf32, #tpu.memory_space<any>> -> memref<1x128xf32, #tpu.memory_space<any>>
      %c0_i32_27 = arith.constant 0 : i32
      %36 = tpu.memref_slice %arg7[%34, %c0_i32_27] : memref<8x128xf32, #tpu.memory_space<vmem>> -> memref<1x128xf32, #tpu.memory_space<vmem>>
      tpu.wait_dma2 semaphore(%arg8 : memref<!tpu.dma_semaphore, #tpu.memory_space<semaphore_mem>>) src(%35 : memref<1x128xf32, #tpu.memory_space<any>>) dst(%36 : memref<1x128xf32, #tpu.memory_space<vmem>>)
    }
    %c8_i32_18 = arith.constant 8 : i32
    %c0_19 = arith.constant 0 : index
    %c0_20 = arith.constant 0 : index
    %29 = vector.load %arg7[%c0_19, %c0_20] : memref<8x128xf32, #tpu.memory_space<vmem>>, vector<8x128xf32>
    %30 = arith.addf %29, %13 : vector<8x128xf32>
    %31 = arith.addf %30, %27 : vector<8x128xf32>
    %c0_21 = arith.constant 0 : index
    %c0_22 = arith.constant 0 : index
    %32 = vector.load %arg6[%c0_21, %c0_22] : memref<8x128xf32, #tpu.memory_space<vmem>>, vector<8x128xf32>
    tpu.vector_store %arg6[%c0_21, %c0_22], %31 {strides = array<i32>} : memref<8x128xf32, #tpu.memory_space<vmem>>, vector<8x128xf32>,
    return
  }
  func.func @transform_0(%arg0: i32, %arg1: memref<16xi32, #tpu.memory_space<smem>>) -> (i32, i32) {
    %c0_i32 = arith.constant 0 : i32
    %c0_i32_0 = arith.constant 0 : i32
    return %arg0, %c0_i32 : i32, i32
  }
  func.func @transform_1(%arg0: i32, %arg1: memref<16xi32, #tpu.memory_space<smem>>) -> (i32, i32) {
    %c0_i32 = arith.constant 0 : i32
    %c0_i32_0 = arith.constant 0 : i32
    %c0_i32_1 = arith.constant 0 : i32
    return %c0_i32, %c0_i32_0 : i32, i32
  }
  func.func @transform_2(%arg0: i32, %arg1: memref<16xi32, #tpu.memory_space<smem>>) -> (i32, i32) {
    %c0_i32 = arith.constant 0 : i32
    %c0_i32_0 = arith.constant 0 : i32
    %c0_i32_1 = arith.constant 0 : i32
    return %c0_i32, %c0_i32_0 : i32, i32
  }
  func.func @transform_4(%arg0: i32, %arg1: memref<16xi32, #tpu.memory_space<smem>>) -> (i32, i32) {
    %c0_i32 = arith.constant 0 : i32
    %c0_i32_0 = arith.constant 0 : i32
    return %arg0, %c0_i32 : i32, i32
  }
}

</mosaic_0001>

<llo_original>
// kernel: tpu_custom_call.1
$region0: #{tpu_custom_call.1}
  #allocation0 [shape = 'u32[]', space=smem, size = 0x4, offset = 0x4, fixed_abs, tag = 'smem constant byte address 0x4 - core index']
  #allocation1 [shape = 'u32[144,128]{1,0:T(1,128)}', space=vmem, size = 0x12000, scoped, tag = 'internal scratch']
  #allocation2 [shape = 'f32[8,128]{1,0:T(8,128)}', space=vmem, size = 0x1000, scoped, tag = 'scratch operand']
  #allocation3 [shape = 's32[1]{0}', space=sflag, size = 0x4, scoped, tag = 'scratch operand']
  #allocation4 [shape = 's32[1]{0}', space=sflag, size = 0x4, scoped, tag = 'scoped memory for tpu_custom_call.1']
  #allocation5 [shape = 'u8[512]{0}', space=smem, size = 0x200, scoped, tag = 'prefetched SMEM operand 0']
  #allocation8 [shape = 's32[]', space=sflag, size = 0x4, offset = 0, fixed_abs, tag = 'sflag constant byte address 0x0 - dummy sync flag']
  #allocation9 [shape = 's32[]', space=sflag, size = 0x4, offset = 0, fixed_abs, tag = 'sflag constant byte address 0x0 - dummy sync flag']
  #allocation10 [shape = 'u32[]', space=smem, size = 0x4, offset = 0x44, fixed_abs, tag = 'smem constant byte address 0x44 - assertion arg 0']
  #allocation11 [shape = 'u32[]', space=smem, size = 0x4, offset = 0x48, fixed_abs, tag = 'smem constant byte address 0x48 - assertion arg 1']
  %s0 = inlined_call_operand.vmem [shape: s32[16], index: 0, kind: input, shape index: {}]
  %s1 = inlined_call_operand.vmem [shape: s32[16,1], index: 1, kind: input, shape index: {}]
  %s2 = inlined_call_operand.vmem [shape: f32[2,128], index: 2, kind: input, shape index: {}]
  %s3 = inlined_call_operand.vmem [shape: f32[8,128], index: 3, kind: input, shape index: {}]
  %s4 = inlined_call_operand.hbm [shape: f32[64,128], index: 4, kind: input, shape index: {}]
  %s5 = inlined_call_operand.hbm [shape: f32[16,128], index: 5, kind: output, shape index: {}]
  %s6 = sld [smem:[#allocation0]]
  $region63: #{tpu_custom_call.1} parent=0
    _
  %s8 = ssub.s32 1, %s6
  %s9 = scalar_select 0, %s8, %s6
  %s10 = sshll.u32 %s0, 4
  %s11 = int_to_ptr.vmem [resolvable:$true] %s10
  %13 = dma.vmem_to_smem %s11, 16, [#allocation5], [#allocation4]
  %14 = dma.done [#allocation4], 16
  %15 = sfence
  $region1: #{tpu_custom_call.1} parent=0
    #allocation6 [shape = 'u8[8192]{0}', space=vmem, size = 0x2000, scoped, tag = 'output window, operand 0']
    #allocation7 [shape = 's32[2]{0}', space=sflag, size = 0x8, scoped, tag = 'scoped memory for tpu_custom_call.1']
    %16 = vsyncpa [#allocation7], 0
    %s17 = scalar_lea.sflag [#allocation7], 1
    %18 = vsyncpa %s17, 0
    loop: start=0, step=1, limit=4
    $region2: #{tpu_custom_call.1} parent=1 // loop_pre_header
      _
    $region3: #{tpu_custom_call.1} parent=1 // loop_header
      %s20 = sphi 0, %s24
      %p21 = scmp.ge.s32.totalorder %s20, 4
      %s30 = sphi 0, %s32
      %s33 = sphi 0, %s30
      %s34 = sphi 0, %s33
      %s50 = sphi 0, %s34
      %s54 = sphi 0, %s54
      %s56 = sphi 0, %s54
      %s57 = sphi 0, %s56
      %s71 = sphi 0, %s57
      %s75 = sphi 0, %s75
      %s77 = sphi 0, %s75
      %s78 = sphi 0, %s77
      %s92 = sphi 0, %s78
      %s98 = sphi 0, %s100
      %s101 = sphi 0, %s98
      %s102 = sphi 0, %s101
      %s118 = sphi 0, %s102
    $region4: #{tpu_custom_call.1} parent=1 // loop_header_branch
      %23 = sbr.rel (%p21) target = $region8
    $region5: #{tpu_custom_call.1} parent=1 // loop_body
      %s25 = ssub.s32 %s20, 1
      %s26 = ssub.s32 %s20, 2
      %s27 = sadd.s32 %s20, 1
      %s28 = ssub.s32 %s20, %s27
      %p29 = scmp.eq.s32.totalorder %s28, 0
      %s31 = sadd.s32 %s30, 1
      %s32 = scalar_select %p29, %s30, %s31
      %p35 = pneg %p29
      %p36 = scmp.eq.s32.totalorder %s20, 1
      %p37 = por %p35, %p36
      %p38 = scmp.ne.s32.totalorder %s30, %s33
      %p39 = scmp.eq.s32.totalorder %s20, 0
      %p40 = por %p38, %p39
      %p41 = scmp.ne.s32.totalorder %s30, %s33
      %p42 = scmp.eq.s32.totalorder %s25, 1
      %p43 = por %p41, %p42
      %p44 = scmp.ne.s32.totalorder %s33, %s34
      %p45 = scmp.eq.s32.totalorder %s25, 0
      %p46 = por %p44, %p45
      %p47 = scmp.ne.s32.totalorder %s33, %s34
      %p48 = scmp.eq.s32.totalorder %s26, 1
      %p49 = por %p47, %p48
      %p51 = scmp.ne.s32.totalorder %s34, %s50
      %p52 = scmp.eq.s32.totalorder %s26, 0
      %p53 = por %p51, %p52
      %s55 = sadd.s32 %s54, 1
      %p58 = scmp.eq.s32.totalorder %s20, 1
      %p59 = scmp.ne.s32.totalorder %s54, %s56
      %p60 = scmp.eq.s32.totalorder %s20, 0
      %p61 = por %p59, %p60
      %p62 = scmp.ne.s32.totalorder %s54, %s56
      %p63 = scmp.eq.s32.totalorder %s25, 1
      %p64 = por %p62, %p63
      %p65 = scmp.ne.s32.totalorder %s56, %s57
      %p66 = scmp.eq.s32.totalorder %s25, 0
      %p67 = por %p65, %p66
      %p68 = scmp.ne.s32.totalorder %s56, %s57
      %p69 = scmp.eq.s32.totalorder %s26, 1
      %p70 = por %p68, %p69
      %p72 = scmp.ne.s32.totalorder %s57, %s71
      %p73 = scmp.eq.s32.totalorder %s26, 0
      %p74 = por %p72, %p73
      %s76 = sadd.s32 %s75, 1
      %p79 = scmp.eq.s32.totalorder %s20, 1
      %p80 = scmp.ne.s32.totalorder %s75, %s77
      %p81 = scmp.eq.s32.totalorder %s20, 0
      %p82 = por %p80, %p81
      %p83 = scmp.ne.s32.totalorder %s75, %s77
      %p84 = scmp.eq.s32.totalorder %s25, 1
      %p85 = por %p83, %p84
      %p86 = scmp.ne.s32.totalorder %s77, %s78
      %p87 = scmp.eq.s32.totalorder %s25, 0
      %p88 = por %p86, %p87
      %p89 = scmp.ne.s32.totalorder %s77, %s78
      %p90 = scmp.eq.s32.totalorder %s26, 1
      %p91 = por %p89, %p90
      %p93 = scmp.ne.s32.totalorder %s78, %s92
      %p94 = scmp.eq.s32.totalorder %s26, 0
      %p95 = por %p93, %p94
      %s96 = ssub.s32 %s20, %s27
      %p97 = scmp.eq.s32.totalorder %s96, 0
      %s99 = sadd.s32 %s98, 1
      %s100 = scalar_select %p97, %s98, %s99
      %p103 = pneg %p97
      %p104 = scmp.eq.s32.totalorder %s20, 1
      %p105 = por %p103, %p104
      %p106 = scmp.ne.s32.totalorder %s98, %s101
      %p107 = scmp.eq.s32.totalorder %s20, 0
      %p108 = por %p106, %p107
      %p109 = scmp.ne.s32.totalorder %s98, %s101
      %p110 = scmp.eq.s32.totalorder %s25, 1
      %p111 = por %p109, %p110
      %p112 = scmp.ne.s32.totalorder %s101, %s102
      %p113 = scmp.eq.s32.totalorder %s25, 0
      %p114 = por %p112, %p113
      %p115 = scmp.ne.s32.totalorder %s101, %s102
      %p116 = scmp.eq.s32.totalorder %s26, 1
      %p117 = por %p115, %p116
      %p119 = scmp.ne.s32.totalorder %s102, %s118
      %p120 = scmp.eq.s32.totalorder %s26, 0
      %p121 = por %p119, %p120
      %p122 = scmp.le.s32.totalorder 1, %s20
      %p123 = scmp.lt.s32.totalorder %s20, 3
      %p124 = pnand %p122, %p123
      %p125 = pneg %p124
      // Predicated region
      $region9: #{tpu_custom_call.1} parent=5 // pred_check
        _
      $region10: #{tpu_custom_call.1} parent=5 // pred_check_branch
        %127 = sbr.rel (%p124) target = $region12
      $region11: #{tpu_custom_call.1} parent=5 // pred_region
        %s128 = ssub.s32 %s20, 1
        // Predicated region
        $region13: #{tpu_custom_call.1} parent=11 // pred_check
          %p129 = pneg %p67
        $region14: #{tpu_custom_call.1} parent=11 // pred_check_branch
          %131 = sbr.rel (%p129) target = $region16
        $region15: #{tpu_custom_call.1} parent=11 // pred_region
          _
        $region16: #{tpu_custom_call.1} parent=11 // pred_fallthru
          _
        // Predicated region
        $region17: #{tpu_custom_call.1} parent=11 // pred_check
          %p132 = pneg %p88
        $region18: #{tpu_custom_call.1} parent=11 // pred_check_branch
          %134 = sbr.rel (%p132) target = $region20
        $region19: #{tpu_custom_call.1} parent=11 // pred_region
          _
        $region20: #{tpu_custom_call.1} parent=11 // pred_fallthru
          _
      $region12: #{tpu_custom_call.1} parent=5 // pred_fallthru
        _
      %p135 = scmp.lt.s32.totalorder %s20, 2
      // Predicated region
      $region21: #{tpu_custom_call.1} parent=5 // pred_check
        %p136 = pneg %p135
      $region22: #{tpu_custom_call.1} parent=5 // pred_check_branch
        %138 = sbr.rel (%p136) target = $region24
      $region23: #{tpu_custom_call.1} parent=5 // pred_region
        // Predicated region
        $region25: #{tpu_custom_call.1} parent=23 // pred_check
          %p139 = pneg %p40
        $region26: #{tpu_custom_call.1} parent=23 // pred_check_branch
          %141 = sbr.rel (%p139) target = $region28
        $region27: #{tpu_custom_call.1} parent=23 // pred_region
          %p142 = scmp.lt.s32.totalorder %s20, 1
          %s143 = scalar_select %p142, %s20, 1
          %s144 = smul.addr %s143, 8
          %s145 = scalar_lea.vmem %s1, %s144
        $region28: #{tpu_custom_call.1} parent=23 // pred_fallthru
          _
      $region24: #{tpu_custom_call.1} parent=5 // pred_fallthru
        _
      %p146 = scmp.le.s32.totalorder 1, %s20
      %p147 = scmp.lt.s32.totalorder %s20, 3
      %p148 = pnand %p146, %p147
      %p149 = pneg %p148
      // Predicated region
      $region29: #{tpu_custom_call.1} parent=5 // pred_check
        _
      $region30: #{tpu_custom_call.1} parent=5 // pred_check_branch
        %151 = sbr.rel (%p148) target = $region32
      $region31: #{tpu_custom_call.1} parent=5 // pred_region
        %s152 = ssub.s32 %s20, 1
        %p153 = scmp.lt.s32.totalorder %s25, 1
        %s154 = scalar_select %p153, %s25, 1
        %s155 = smul.addr %s154, 8
        %s156 = scalar_lea.vmem %s1, %s155
        %p157 = pneg %p46
        %p158 = pneg %p43
        %p159 = pneg %p67
        %p160 = pneg %p64
        %p161 = pneg %p88
        %p162 = pneg %p85
        %p163 = pneg %p114
        %p164 = pneg %p111
        %s165 = sand.u32 %s101, 1
        %s166 = scalar_lea.sflag [#allocation7], %s165
        %s167 = sand.u32 %s101, 1
        %s168 = smul.addr %s167, 8
        %s169 = scalar_lea.vmem [#allocation6], %s168
        %p170 = scmp.lt.s32.totalorder %s25, 1
        %s171 = scalar_select %p170, %s25, 1
        %s172 = smul.addr %s171, 8
        %s173 = scalar_lea.vmem %s1, %s172
        %s174 = smul.u32 %s25, 8
        loop: start=0, step=1, limit=8
        $region33: #{tpu_custom_call.1} parent=31 // loop_pre_header
          _
        $region34: #{tpu_custom_call.1} parent=31 // loop_header
          %s176 = sphi 0, %s180
          %p177 = scmp.ge.s32.totalorder %s176, 8
        $region35: #{tpu_custom_call.1} parent=31 // loop_header_branch
          %179 = sbr.rel (%p177) target = $region39
        $region36: #{tpu_custom_call.1} parent=31 // loop_body
          %s181 = sadd.s32 %s174, %s176
          %s182 = sld [smem:[#allocation5 + %s181]]
          %p183 = scmp.gt.s32.totalorder %s182, 0
          %s184 = scalar_select %p183, %s182, 0
          %p185 = scmp.lt.s32.totalorder %s184, 63
          %s186 = scalar_select %p185, %s184, 63
          %s187 = smul.addr %s186, 16
          %s188 = scalar_lea.hbm %s4, %s187
          %s189 = scalar_lea.vmem [#allocation2], %s176
          // Predicated region
          $region40: #{tpu_custom_call.1} parent=36 // pred_check
            _
          $region41: #{tpu_custom_call.1} parent=36 // pred_check_branch
            %191 = sbr.rel target = $region43
          $region42: #{tpu_custom_call.1} parent=36 // pred_region
            %192 = sst [smem:[#allocation10]] [#allocation9]
            %193 = sst [smem:[#allocation11]] [#allocation8]
          $region43: #{tpu_custom_call.1} parent=36 // pred_fallthru
            _
          %195 = shalt.err (0)
          %s197 = sshll.u32 %s189, 4
          %s198 = int_to_ptr.vmem [resolvable:$true] %s197
          %200 = dma.hbm_to_vmem [thread:$0]  %s188, 16, %s198, [#allocation3]
        $region37: #{tpu_custom_call.1} parent=31 // loop_footer
          %s180 = sadd.s32 1, %s176
        $region38: #{tpu_custom_call.1} parent=31 // loop_footer_branch
          %175 = sbr.rel target = $region34
        $region39: #{tpu_custom_call.1} parent=31 // loop_exit
          _
        %v201 = vld [vmem:[%s173] sm:$0xff]
        %v202 = vld [vmem:[%s2] sm:$0x1]
        %v203 = vlaneseq
        %v204 = vshrl.u32 %v203, 7
        %v205 = vsub.s32 0, %v204
        %v206 = vrot.slane %v202, %v205
        %vm207 = vcmp.eq.s32.totalorder %v201, 1
        %v208 = vld [vmem:[%s2 + $0x1] sm:$0x1]
        %v209 = vsel %vm207, 1, 0
        %210 = vset.pattern.permute.xlu0 0
        %211 = vperm.xlu0 %210, %v209
        %v212 = vpop.permute.xlu0 %211
        %vm213 = vcmp.eq.s32.totalorder %v212, 1
        %v214 = vlaneseq
        %v215 = vshrl.u32 %v214, 7
        %v216 = vsub.s32 0, %v215
        %v217 = vrot.slane %v208, %v216
        %v218 = vsel %vm213, %v217, %v206
        %v219 = vld [vmem:[%s3] sm:$0xff]
        loop: start=0, step=1, limit=8
        $region44: #{tpu_custom_call.1} parent=31 // loop_pre_header
          _
        $region45: #{tpu_custom_call.1} parent=31 // loop_header
          %s221 = sphi 0, %s225
          %p222 = scmp.ge.s32.totalorder %s221, 8
        $region46: #{tpu_custom_call.1} parent=31 // loop_header_branch
          %224 = sbr.rel (%p222) target = $region50
        $region47: #{tpu_custom_call.1} parent=31 // loop_body
          %s226 = smul.u32 1, 1
          %s227 = sshll.u32 %s226, 4
          %228 = dma.done [#allocation3], %s227
        $region48: #{tpu_custom_call.1} parent=31 // loop_footer
          %s225 = sadd.s32 1, %s221
        $region49: #{tpu_custom_call.1} parent=31 // loop_footer_branch
          %220 = sbr.rel target = $region45
        $region50: #{tpu_custom_call.1} parent=31 // loop_exit
          _
        %v229 = vld [vmem:[#allocation2] sm:$0xff]
        %v230 = vadd.f32 %v229, %v218
        %v231 = vadd.f32 %v230, %v219
        %232 = vst [vmem:[%s169] sm:$0xff] %v231
        %s233 = sand.u32 %s101, 1
        %s234 = scalar_lea.sflag [#allocation7], %s233
        %s235 = sand.u32 %s101, 1
        %s236 = smul.addr %s235, 8
        %s237 = scalar_lea.vmem [#allocation6], %s236
        // Predicated region
        $region51: #{tpu_custom_call.1} parent=31 // pred_check
          %p238 = pneg %p111
        $region52: #{tpu_custom_call.1} parent=31 // pred_check_branch
          %240 = sbr.rel (%p238) target = $region54
        $region53: #{tpu_custom_call.1} parent=31 // pred_region
          %s242 = ssub.s32 128, 128
          %243 = vsyncadd %s234, %s242
          %s244 = smul.addr %s25, 128
          %s245 = scalar_lea.hbm %s5, %s244
          %s247 = sshll.u32 %s237, 4
          %s248 = int_to_ptr.vmem [resolvable:$true] %s247
          %250 = dma.vmem_to_hbm [thread:$0]  %s248, 128, %s245, %s234
        $region54: #{tpu_custom_call.1} parent=31 // pred_fallthru
          _
      $region32: #{tpu_custom_call.1} parent=5 // pred_fallthru
        _
      %p251 = scmp.le.s32.totalorder 2, %s20
      // Predicated region
      $region55: #{tpu_custom_call.1} parent=5 // pred_check
        %p252 = pneg %p251
      $region56: #{tpu_custom_call.1} parent=5 // pred_check_branch
        %254 = sbr.rel (%p252) target = $region58
      $region57: #{tpu_custom_call.1} parent=5 // pred_region
        %s255 = ssub.s32 %s20, 2
        // Predicated region
        $region59: #{tpu_custom_call.1} parent=57 // pred_check
          %p256 = pneg %p117
        $region60: #{tpu_custom_call.1} parent=57 // pred_check_branch
          %258 = sbr.rel (%p256) target = $region62
        $region61: #{tpu_custom_call.1} parent=57 // pred_region
          %s259 = sand.u32 %s102, 1
          %s260 = scalar_lea.sflag [#allocation7], %s259
          %s261 = sand.u32 %s102, 1
          %s262 = smul.addr %s261, 8
          %s263 = scalar_lea.vmem [#allocation6], %s262
          %264 = dma.done %s260, 128
        $region62: #{tpu_custom_call.1} parent=57 // pred_fallthru
          _
      $region58: #{tpu_custom_call.1} parent=5 // pred_fallthru
        _
    $region6: #{tpu_custom_call.1} parent=1 // loop_footer
      %s24 = sadd.s32 1, %s20
    $region7: #{tpu_custom_call.1} parent=1 // loop_footer_branch
      %19 = sbr.rel target = $region3
    $region8: #{tpu_custom_call.1} parent=1 // loop_exit
      _
    %265 = vsyncpa [#allocation7], 1
    %s266 = scalar_lea.sflag [#allocation7], 1
    %267 = vsyncpa %s266, 1
  %268 = vsyncmov [#allocation3]
  %s269 = vpop.sfrf %268
  %p270 = scmp.eq.s32.totalorder %s269, 0
  %p271 = pneg %p270
  %273 = shalt.err (%p271)

</llo_original>
